<compile_context>
chip_gen: v7x
topology: tpu7x:2x2x1
jax: 0.10.0
libtpu: 0.0.40
codegen_flags: <defaults>
</compile_context>

<pallas_src>
import math
import jax
import jax.numpy as jnp
from jax.experimental import pallas as pl
from jax.experimental.pallas import tpu as pltpu


# ---------------------------------------------------------------------------
# Fused kernel: one grid step == one GRU layer.
# ---------------------------------------------------------------------------
def _decoder_gru_kernel(x_ref, prev_ref, wih_ref, whh_ref, bih_ref, bhh_ref,
                        out_ref, act_ref):
    layer = pl.program_id(0)
    H = prev_ref.shape[-1]
    Kp = act_ref.shape[-1]

    # Layer 0 consumes the (padded) network input; later layers consume the
    # previous layer's output already resident in the VMEM scratch.
    @pl.when(layer == 0)
    def _():
        act_ref[...] = x_ref[...].astype(jnp.float32)

    x = act_ref[...]                                    # (B, Kp)  f32
    h = prev_ref[...].astype(jnp.float32)               # (B, H)

    gi = jnp.dot(x, wih_ref[...].astype(jnp.float32),
                 preferred_element_type=jnp.float32) + bih_ref[...].astype(jnp.float32)
    gh = jnp.dot(h, whh_ref[...].astype(jnp.float32),
                 preferred_element_type=jnp.float32) + bhh_ref[...].astype(jnp.float32)

    # H is a multiple of 128 -> lane-aligned static slices of the 3H axis.
    r = jax.nn.sigmoid(gi[:, :H] + gh[:, :H])
    z = jax.nn.sigmoid(gi[:, H:2 * H] + gh[:, H:2 * H])
    n = jnp.tanh(gi[:, 2 * H:] + r * gh[:, 2 * H:])
    h_new = (1.0 - z) * n + z * h

    out_ref[...] = h_new.astype(out_ref.dtype)

    # Carry this layer's output as the next layer's input.  Dropout between
    # layers is eval-mode identity.  If input_size != hidden, the extra K
    # columns line up with zero-padded weight rows, so padding is harmless.
    if Kp == H:
        act_ref[...] = h_new
    else:
        act_ref[...] = jnp.pad(h_new, ((0, 0), (0, Kp - H)))


# ---------------------------------------------------------------------------
# Param packing (done once, outside the hot path): transpose, pad, stack.
# ---------------------------------------------------------------------------
def pack_decoder_params(params, input_size, hidden):
    num_layers = len(params)
    k_pad = max(input_size, hidden)
    k_pad = ((k_pad + 127) // 128) * 128          # lane-aligned contraction dim

    w_ih_l, w_hh_l, b_ih_l, b_hh_l = [], [], [], []
    for (w_ih, w_hh, b_ih, b_hh) in params:
        w_ih_t = jnp.transpose(w_ih)              # (in_features, 3H)
        pad = k_pad - w_ih_t.shape[0]
        if pad:
            w_ih_t = jnp.pad(w_ih_t, ((0, pad), (0, 0)))
        w_ih_l.append(w_ih_t)
        w_hh_l.append(jnp.transpose(w_hh))        # (H, 3H)
        b_ih_l.append(b_ih.reshape(1, 3 * hidden))
        b_hh_l.append(b_hh.reshape(1, 3 * hidden))

    return dict(
        w_ih=jnp.stack(w_ih_l, axis=0),           # (L, Kp, 3H)
        w_hh=jnp.stack(w_hh_l, axis=0),           # (L, H, 3H)
        b_ih=jnp.stack(b_ih_l, axis=0),           # (L, 1, 3H)
        b_hh=jnp.stack(b_hh_l, axis=0),           # (L, 1, 3H)
        input_size=input_size, hidden=hidden,
        k_pad=k_pad, num_layers=num_layers,
    )


# ---------------------------------------------------------------------------
# Forward: single fused pallas_call over all layers.
# ---------------------------------------------------------------------------
def decoder_rnn_forward(packed, inp, previous_state):
    """
    inp:            (B, input_size)
    previous_state: (B, num_layers, hidden)
    returns:        (B, num_layers, hidden)
    """
    B = inp.shape[0]
    L = packed["num_layers"]
    H = packed["hidden"]
    Kp = packed["k_pad"]

    x = inp
    if inp.shape[1] < Kp:
        x = jnp.pad(inp, ((0, 0), (0, Kp - inp.shape[1])))

    prev_t = jnp.transpose(previous_state, (1, 0, 2))     # (L, B, H)

    out_t = pl.pallas_call(
        _decoder_gru_kernel,
        out_shape=jax.ShapeDtypeStruct((L, B, H), inp.dtype),
        grid_spec=pltpu.PrefetchScalarGridSpec(
            num_scalar_prefetch=0,
            grid=(L,),
            in_specs=[
                pl.BlockSpec((B, Kp), lambda l: (0, 0)),            # x (resident)
                pl.BlockSpec((None, B, H), lambda l: (l, 0, 0)),    # prev state
                pl.BlockSpec((None, Kp, 3 * H), lambda l: (l, 0, 0)),
                pl.BlockSpec((None, H, 3 * H), lambda l: (l, 0, 0)),
                pl.BlockSpec((None, 1, 3 * H), lambda l: (l, 0, 0)),
                pl.BlockSpec((None, 1, 3 * H), lambda l: (l, 0, 0)),
            ],
            out_specs=pl.BlockSpec((None, B, H), lambda l: (l, 0, 0)),
            scratch_shapes=[pltpu.VMEM((B, Kp), jnp.float32)],      # layer carry
        ),
        compiler_params=pltpu.CompilerParams(
            dimension_semantics=("arbitrary",)),                    # sequential layers
    )(x, prev_t, packed["w_ih"], packed["w_hh"], packed["b_ih"], packed["b_hh"])

    return jnp.transpose(out_t, (1, 0, 2))                # (B, L, H)


# ---------------------------------------------------------------------------
# PyTorch-style init: U(-1/sqrt(H), 1/sqrt(H)).
# ---------------------------------------------------------------------------
def init_decoder_params(key, num_layers, hidden, input_size, dtype=jnp.float32):
    params = []
    bound = 1.0 / math.sqrt(hidden)
    for l in range(num_layers):
        in_sz = input_size if l == 0 else hidden
        key, k1, k2, k3, k4 = jax.random.split(key, 5)
        w_ih = jax.random.uniform(k1, (3 * hidden, in_sz), dtype, -bound, bound)
        w_hh = jax.random.uniform(k2, (3 * hidden, hidden), dtype, -bound, bound)
        b_ih = jax.random.uniform(k3, (3 * hidden,), dtype, -bound, bound)
        b_hh = jax.random.uniform(k4, (3 * hidden,), dtype, -bound, bound)
        params.append((w_ih, w_hh, b_ih, b_hh))
    return params


if __name__ == "__main__":
    batch = 8
    input_size = 128
    hidden = 128          # multiple of 128 -> lane-aligned gate slices
    num_layers = 3
    dropout = 0.1         # eval-mode -> identity
    # TODO(synk): training-mode dropout would need pltpu.prng_seed/prng_random_bits.
    # TODO(synk): for autoregressive decode, fuse the time loop too (lax.scan or
    #             an extra grid axis) so weights stay VMEM-resident across steps.

    root = jax.random.PRNGKey(0)
    k_params, k_in, k_state = jax.random.split(root, 3)

    params = init_decoder_params(k_params, num_layers, hidden, input_size)
    packed = pack_decoder_params(params, input_size, hidden)

    x = jax.random.normal(k_in, (batch, input_size), jnp.float32)
    prev_state = jax.random.normal(k_state, (batch, num_layers, hidden), jnp.float32)

    fwd = jax.jit(lambda xx, ps: decoder_rnn_forward(packed, xx, ps))
    new_state = jax.block_until_ready(fwd(x, prev_state))

    # Pure-JAX reference using the original (untransposed) params.
    def ref_forward(params, inp, prev):
        outs = []
        cur = inp
        for l, (w_ih, w_hh, b_ih, b_hh) in enumerate(params):
            h = prev[:, l]
            gi = cur @ w_ih.T + b_ih
            gh = h @ w_hh.T + b_hh
            H = h.shape[-1]
            r = jax.nn.sigmoid(gi[:, :H] + gh[:, :H])
            z = jax.nn.sigmoid(gi[:, H:2 * H] + gh[:, H:2 * H])
            n = jnp.tanh(gi[:, 2 * H:] + r * gh[:, 2 * H:])
            h_new = (1.0 - z) * n + z * h
            outs.append(h_new)
            cur = h_new
        return jnp.stack(outs, axis=1)

    ref = jax.block_until_ready(ref_forward(params, x, prev_state))
    assert new_state.shape == (batch, num_layers, hidden)
    max_err = float(jnp.max(jnp.abs(new_state - ref)))
    assert jnp.allclose(new_state, ref, atol=1e-4, rtol=1e-4), max_err

    print("KERNEL_OK")
</pallas_src>

<mosaic_0001>
module attributes {stable_mosaic.version = 11 : i64} {
  func.func @_decoder_gru_kernel(%arg0: i32, %arg1: memref<8x128xf32, #tpu.memory_space<vmem>>, %arg2: memref<1x8x128xf32, #tpu.memory_space<vmem>>, %arg3: memref<1x128x384xf32, #tpu.memory_space<vmem>>, %arg4: memref<1x128x384xf32, #tpu.memory_space<vmem>>, %arg5: memref<1x1x384xf32, #tpu.memory_space<vmem>>, %arg6: memref<1x1x384xf32, #tpu.memory_space<vmem>>, %arg7: memref<1x8x128xf32, #tpu.memory_space<vmem>>, %arg8: memref<8x128xf32, #tpu.memory_space<vmem>>) attributes {dimension_semantics = [#tpu.dimension_semantics<arbitrary>], iteration_bounds = array<i64: 3>, scalar_prefetch = 0 : i64, scratch_operands = 1 : i64, tpu.core_type = #tpu.core_type<tc>, window_params = [{pipeline_mode = #tpu.pipeline_mode<synchronous>, transform_indices = @transform_0, window_bounds = array<i64: 8, 128>}, {transform_indices = @transform_1, window_bounds = array<i64: 1, 8, 128>}, {transform_indices = @transform_2, window_bounds = array<i64: 1, 128, 384>}, {transform_indices = @transform_3, window_bounds = array<i64: 1, 128, 384>}, {transform_indices = @transform_4, window_bounds = array<i64: 1, 1, 384>}, {transform_indices = @transform_5, window_bounds = array<i64: 1, 1, 384>}, {transform_indices = @transform_6, window_bounds = array<i64: 1, 8, 128>}]} {
    %c0_i32 = arith.constant 0 : i32
    %0 = arith.cmpi eq, %arg0, %c0_i32 : i32
    %1 = arith.extui %0 : i1 to i32
    %c0_i32_0 = arith.constant 0 : i32
    %2 = arith.cmpi ne, %1, %c0_i32_0 : i32
    scf.if %2 {
      %c0_26 = arith.constant 0 : index
      %c0_27 = arith.constant 0 : index
      %50 = vector.load %arg1[%c0_26, %c0_27] : memref<8x128xf32, #tpu.memory_space<vmem>>, vector<8x128xf32>
      %c0_28 = arith.constant 0 : index
      %c0_29 = arith.constant 0 : index
      %51 = vector.load %arg8[%c0_28, %c0_29] : memref<8x128xf32, #tpu.memory_space<vmem>>, vector<8x128xf32>
      tpu.vector_store %arg8[%c0_28, %c0_29], %50 {strides = array<i32>} : memref<8x128xf32, #tpu.memory_space<vmem>>, vector<8x128xf32>,
    } else {
    }
    %c0 = arith.constant 0 : index
    %c0_1 = arith.constant 0 : index
    %3 = vector.load %arg8[%c0, %c0_1] : memref<8x128xf32, #tpu.memory_space<vmem>>, vector<8x128xf32>
    %c0_2 = arith.constant 0 : index
    %c0_3 = arith.constant 0 : index
    %c0_4 = arith.constant 0 : index
    %4 = vector.load %arg2[%c0_2, %c0_3, %c0_4] : memref<1x8x128xf32, #tpu.memory_space<vmem>>, vector<1x8x128xf32>
    %5 = vector.shape_cast %4 : vector<1x8x128xf32> to vector<8x128xf32>
    %c0_5 = arith.constant 0 : index
    %c0_6 = arith.constant 0 : index
    %c0_7 = arith.constant 0 : index
    %6 = vector.load %arg3[%c0_5, %c0_6, %c0_7] : memref<1x128x384xf32, #tpu.memory_space<vmem>>, vector<1x128x384xf32>
    %7 = vector.shape_cast %6 : vector<1x128x384xf32> to vector<128x384xf32>
    %cst = arith.constant dense<0.000000e+00> : vector<8x384xf32>
    %8 = tpu.matmul %3, %7, %cst {dimension_numbers = #tpu.dot_dimension_numbers<[1], [0], [0], [1], [0, 0, 1, 1], [], []>} : vector<8x128xf32>, vector<128x384xf32>, vector<8x384xf32> -> vector<8x384xf32>
    %c0_8 = arith.constant 0 : index
    %c0_9 = arith.constant 0 : index
    %c0_10 = arith.constant 0 : index
    %9 = vector.load %arg5[%c0_8, %c0_9, %c0_10] : memref<1x1x384xf32, #tpu.memory_space<vmem>>, vector<1x1x384xf32>
    %10 = vector.shape_cast %9 : vector<1x1x384xf32> to vector<1x384xf32>
    %11 = vector.broadcast %10 : vector<1x384xf32> to vector<8x384xf32>
    %12 = arith.addf %8, %11 : vector<8x384xf32>
    %c0_11 = arith.constant 0 : index
    %c0_12 = arith.constant 0 : index
    %c0_13 = arith.constant 0 : index
    %13 = vector.load %arg4[%c0_11, %c0_12, %c0_13] : memref<1x128x384xf32, #tpu.memory_space<vmem>>, vector<1x128x384xf32>
    %14 = vector.shape_cast %13 : vector<1x128x384xf32> to vector<128x384xf32>
    %cst_14 = arith.constant dense<0.000000e+00> : vector<8x384xf32>
    %15 = tpu.matmul %5, %14, %cst_14 {dimension_numbers = #tpu.dot_dimension_numbers<[1], [0], [0], [1], [0, 0, 1, 1], [], []>} : vector<8x128xf32>, vector<128x384xf32>, vector<8x384xf32> -> vector<8x384xf32>
    %c0_15 = arith.constant 0 : index
    %c0_16 = arith.constant 0 : index
    %c0_17 = arith.constant 0 : index
    %16 = vector.load %arg6[%c0_15, %c0_16, %c0_17] : memref<1x1x384xf32, #tpu.memory_space<vmem>>, vector<1x1x384xf32>
    %17 = vector.shape_cast %16 : vector<1x1x384xf32> to vector<1x384xf32>
    %18 = vector.broadcast %17 : vector<1x384xf32> to vector<8x384xf32>
    %19 = arith.addf %15, %18 : vector<8x384xf32>
    %20 = vector.extract_strided_slice %12 {offsets = [0, 0], sizes = [8, 128], strides = [1, 1]} : vector<8x384xf32> to vector<8x128xf32>
    %21 = vector.extract_strided_slice %19 {offsets = [0, 0], sizes = [8, 128], strides = [1, 1]} : vector<8x384xf32> to vector<8x128xf32>
    %22 = arith.addf %20, %21 : vector<8x128xf32>
    %23 = arith.negf %22 : vector<8x128xf32>
    %24 = math.exp %23 : vector<8x128xf32>
    %cst_18 = arith.constant 1.000000e+00 : f32
    %25 = vector.broadcast %cst_18 : f32 to vector<8x128xf32>
    %26 = arith.addf %25, %24 : vector<8x128xf32>
    %27 = arith.divf %25, %26 : vector<8x128xf32>
    %28 = vector.extract_strided_slice %12 {offsets = [0, 128], sizes = [8, 128], strides = [1, 1]} : vector<8x384xf32> to vector<8x128xf32>
    %29 = vector.extract_strided_slice %19 {offsets = [0, 128], sizes = [8, 128], strides = [1, 1]} : vector<8x384xf32> to vector<8x128xf32>
    %30 = arith.addf %28, %29 : vector<8x128xf32>
    %31 = arith.negf %30 : vector<8x128xf32>
    %32 = math.exp %31 : vector<8x128xf32>
    %cst_19 = arith.constant 1.000000e+00 : f32
    %33 = vector.broadcast %cst_19 : f32 to vector<8x128xf32>
    %34 = arith.addf %33, %32 : vector<8x128xf32>
    %35 = arith.divf %33, %34 : vector<8x128xf32>
    %36 = vector.extract_strided_slice %12 {offsets = [0, 256], sizes = [8, 128], strides = [1, 1]} : vector<8x384xf32> to vector<8x128xf32>
    %37 = vector.extract_strided_slice %19 {offsets = [0, 256], sizes = [8, 128], strides = [1, 1]} : vector<8x384xf32> to vector<8x128xf32>
    %38 = arith.mulf %27, %37 : vector<8x128xf32>
    %39 = arith.addf %36, %38 : vector<8x128xf32>
    %40 = math.tanh %39 : vector<8x128xf32>
    %cst_20 = arith.constant 1.000000e+00 : f32
    %41 = vector.broadcast %cst_20 : f32 to vector<8x128xf32>
    %42 = arith.subf %41, %35 : vector<8x128xf32>
    %43 = arith.mulf %42, %40 : vector<8x128xf32>
    %44 = arith.mulf %35, %5 : vector<8x128xf32>
    %45 = arith.addf %43, %44 : vector<8x128xf32>
    %c0_21 = arith.constant 0 : index
    %c0_22 = arith.constant 0 : index
    %c0_23 = arith.constant 0 : index
    %46 = vector.load %arg7[%c0_21, %c0_22, %c0_23] : memref<1x8x128xf32, #tpu.memory_space<vmem>>, vector<1x8x128xf32>
    %47 = vector.shape_cast %46 : vector<1x8x128xf32> to vector<8x128xf32>
    %48 = vector.shape_cast %45 : vector<8x128xf32> to vector<1x8x128xf32>
    tpu.vector_store %arg7[%c0_21, %c0_22, %c0_23], %48 {strides = array<i32>} : memref<1x8x128xf32, #tpu.memory_space<vmem>>, vector<1x8x128xf32>,
    %c0_24 = arith.constant 0 : index
    %c0_25 = arith.constant 0 : index
    %49 = vector.load %arg8[%c0_24, %c0_25] : memref<8x128xf32, #tpu.memory_space<vmem>>, vector<8x128xf32>
    tpu.vector_store %arg8[%c0_24, %c0_25], %45 {strides = array<i32>} : memref<8x128xf32, #tpu.memory_space<vmem>>, vector<8x128xf32>,
    return
  }
  func.func @transform_0(%arg0: i32) -> (i32, i32) {
    %c0_i32 = arith.constant 0 : i32
    %c0_i32_0 = arith.constant 0 : i32
    %c0_i32_1 = arith.constant 0 : i32
    return %c0_i32, %c0_i32_0 : i32, i32
  }
  func.func @transform_1(%arg0: i32) -> (i32, i32, i32) {
    %c0_i32 = arith.constant 0 : i32
    %c0_i32_0 = arith.constant 0 : i32
    %c0_i32_1 = arith.constant 0 : i32
    return %arg0, %c0_i32, %c0_i32_0 : i32, i32, i32
  }
  func.func @transform_2(%arg0: i32) -> (i32, i32, i32) {
    %c0_i32 = arith.constant 0 : i32
    %c0_i32_0 = arith.constant 0 : i32
    %c0_i32_1 = arith.constant 0 : i32
    return %arg0, %c0_i32, %c0_i32_0 : i32, i32, i32
  }
  func.func @transform_3(%arg0: i32) -> (i32, i32, i32) {
    %c0_i32 = arith.constant 0 : i32
    %c0_i32_0 = arith.constant 0 : i32
    %c0_i32_1 = arith.constant 0 : i32
    return %arg0, %c0_i32, %c0_i32_0 : i32, i32, i32
  }
  func.func @transform_4(%arg0: i32) -> (i32, i32, i32) {
    %c0_i32 = arith.constant 0 : i32
    %c0_i32_0 = arith.constant 0 : i32
    %c0_i32_1 = arith.constant 0 : i32
    return %arg0, %c0_i32, %c0_i32_0 : i32, i32, i32
  }
  func.func @transform_5(%arg0: i32) -> (i32, i32, i32) {
    %c0_i32 = arith.constant 0 : i32
    %c0_i32_0 = arith.constant 0 : i32
    %c0_i32_1 = arith.constant 0 : i32
    return %arg0, %c0_i32, %c0_i32_0 : i32, i32, i32
  }
  func.func @transform_6(%arg0: i32) -> (i32, i32, i32) {
    %c0_i32 = arith.constant 0 : i32
    %c0_i32_0 = arith.constant 0 : i32
    %c0_i32_1 = arith.constant 0 : i32
    return %arg0, %c0_i32, %c0_i32_0 : i32, i32, i32
  }
}

</mosaic_0001>

<llo_original>
// kernel: _lambda_.1
$region0: #{_lambda_.1}
  #allocation0 [shape = 'u32[]', space=smem, size = 0x4, offset = 0x4, fixed_abs, tag = 'smem constant byte address 0x4 - core index']
  #allocation1 [shape = 'u32[144,128]{1,0:T(1,128)}', space=vmem, size = 0x12000, scoped, tag = 'internal scratch']
  #allocation2 [shape = 'f32[8,128]{1,0:T(8,128)}', space=vmem, size = 0x1000, scoped, tag = 'scratch operand']
  %s0 = inlined_call_operand.hbm [shape: f32[8,128], index: 0, kind: input, shape index: {}]
  %s1 = inlined_call_operand.hbm [shape: f32[3,8,128], index: 1, kind: input, shape index: {}]
  %s2 = inlined_call_operand.hbm [shape: f32[3,128,384], index: 2, kind: input, shape index: {}]
  %s3 = inlined_call_operand.hbm [shape: f32[3,128,384], index: 3, kind: input, shape index: {}]
  %s4 = inlined_call_operand.vmem [shape: f32[3,1,384], index: 4, kind: input, shape index: {}]
  %s5 = inlined_call_operand.vmem [shape: f32[3,1,384], index: 5, kind: input, shape index: {}]
  %s6 = inlined_call_operand.hbm [shape: f32[3,8,128], index: 6, kind: output, shape index: {}]
  %s7 = sld [smem:[#allocation0]]
  $region77: #{_lambda_.1} parent=0
    _
  %s9 = ssub.s32 1, %s7
  %s10 = scalar_select 0, %s9, %s7
  $region1: #{_lambda_.1} parent=0
    #allocation3 [shape = 'u8[4096]{0}', space=vmem, size = 0x1000, scoped, tag = 'input window, operand 0, single buffered']
    #allocation4 [shape = 's32[2]{0}', space=sflag, size = 0x8, scoped, tag = 'scoped memory for _lambda_.1']
    #allocation5 [shape = 's32[2]{0}', space=sflag, size = 0x8, scoped, tag = 'scoped memory for _lambda_.1']
    #allocation6 [shape = 'u8[8192]{0}', space=vmem, size = 0x2000, scoped, tag = 'input window, operand 1']
    #allocation7 [shape = 's32[2]{0}', space=sflag, size = 0x8, scoped, tag = 'scoped memory for _lambda_.1']
    #allocation8 [shape = 'u8[393216]{0}', space=vmem, size = 0x60000, scoped, tag = 'input window, operand 2']
    #allocation9 [shape = 'u8[393216]{0}', space=vmem, size = 0x60000, scoped, tag = 'input window, operand 3']
    #allocation10 [shape = 's32[2]{0}', space=sflag, size = 0x8, scoped, tag = 'scoped memory for _lambda_.1']
    #allocation11 [shape = 'u8[8192]{0}', space=vmem, size = 0x2000, scoped, tag = 'output window, operand 0']
    %11 = vsyncpa [#allocation4], 0
    %12 = vsyncpa [#allocation7], 0
    %s13 = scalar_lea.sflag [#allocation7], 1
    %14 = vsyncpa %s13, 0
    %15 = vsyncpa [#allocation10], 0
    %s16 = scalar_lea.sflag [#allocation10], 1
    %17 = vsyncpa %s16, 0
    %18 = vsyncpa [#allocation5], 0
    %s19 = scalar_lea.sflag [#allocation5], 1
    %20 = vsyncpa %s19, 0
    loop: start=0, step=1, limit=5
    $region2: #{_lambda_.1} parent=1 // loop_pre_header
      _
    $region3: #{_lambda_.1} parent=1 // loop_header
      %s22 = sphi 0, %s26
      %p23 = scmp.ge.s32.totalorder %s22, 5
      %s30 = sphi 0, %s30
      %s32 = sphi 0, %s30
      %s33 = sphi 0, %s32
      %s47 = sphi 0, %s33
      %s53 = sphi 0, %s55
      %s56 = sphi 0, %s53
      %s57 = sphi 0, %s56
      %s73 = sphi 0, %s57
      %s79 = sphi 0, %s81
      %s82 = sphi 0, %s79
      %s83 = sphi 0, %s82
      %s99 = sphi 0, %s83
      %s105 = sphi 0, %s107
      %s108 = sphi 0, %s105
      %s109 = sphi 0, %s108
      %s125 = sphi 0, %s109
      %s131 = sphi 0, %s133
      %s134 = sphi 0, %s131
      %s135 = sphi 0, %s134
      %s151 = sphi 0, %s135
      %s157 = sphi 0, %s159
      %s160 = sphi 0, %s157
      %s161 = sphi 0, %s160
      %s177 = sphi 0, %s161
      %s183 = sphi 0, %s185
      %s186 = sphi 0, %s183
      %s187 = sphi 0, %s186
      %s203 = sphi 0, %s187
    $region4: #{_lambda_.1} parent=1 // loop_header_branch
      %25 = sbr.rel (%p23) target = $region8
    $region5: #{_lambda_.1} parent=1 // loop_body
      %s27 = ssub.s32 %s22, 1
      %s28 = ssub.s32 %s22, 2
      %s29 = sadd.s32 %s22, 1
      %s31 = sadd.s32 %s30, 1
      %p34 = scmp.eq.s32.totalorder %s22, 2
      %p35 = scmp.ne.s32.totalorder %s30, %s32
      %p36 = scmp.eq.s32.totalorder %s22, 0
      %p37 = por %p35, %p36
      %p38 = scmp.ne.s32.totalorder %s30, %s32
      %p39 = scmp.eq.s32.totalorder %s27, 2
      %p40 = por %p38, %p39
      %p41 = scmp.ne.s32.totalorder %s32, %s33
      %p42 = scmp.eq.s32.totalorder %s27, 0
      %p43 = por %p41, %p42
      %p44 = scmp.ne.s32.totalorder %s32, %s33
      %p45 = scmp.eq.s32.totalorder %s28, 2
      %p46 = por %p44, %p45
      %p48 = scmp.ne.s32.totalorder %s33, %s47
      %p49 = scmp.eq.s32.totalorder %s28, 0
      %p50 = por %p48, %p49
      %s51 = ssub.s32 %s22, %s29
      %p52 = scmp.eq.s32.totalorder %s51, 0
      %s54 = sadd.s32 %s53, 1
      %s55 = scalar_select %p52, %s53, %s54
      %p58 = pneg %p52
      %p59 = scmp.eq.s32.totalorder %s22, 2
      %p60 = por %p58, %p59
      %p61 = scmp.ne.s32.totalorder %s53, %s56
      %p62 = scmp.eq.s32.totalorder %s22, 0
      %p63 = por %p61, %p62
      %p64 = scmp.ne.s32.totalorder %s53, %s56
      %p65 = scmp.eq.s32.totalorder %s27, 2
      %p66 = por %p64, %p65
      %p67 = scmp.ne.s32.totalorder %s56, %s57
      %p68 = scmp.eq.s32.totalorder %s27, 0
      %p69 = por %p67, %p68
      %p70 = scmp.ne.s32.totalorder %s56, %s57
      %p71 = scmp.eq.s32.totalorder %s28, 2
      %p72 = por %p70, %p71
      %p74 = scmp.ne.s32.totalorder %s57, %s73
      %p75 = scmp.eq.s32.totalorder %s28, 0
      %p76 = por %p74, %p75
      %s77 = ssub.s32 %s22, %s29
      %p78 = scmp.eq.s32.totalorder %s77, 0
      %s80 = sadd.s32 %s79, 1
      %s81 = scalar_select %p78, %s79, %s80
      %p84 = pneg %p78
      %p85 = scmp.eq.s32.totalorder %s22, 2
      %p86 = por %p84, %p85
      %p87 = scmp.ne.s32.totalorder %s79, %s82
      %p88 = scmp.eq.s32.totalorder %s22, 0
      %p89 = por %p87, %p88
      %p90 = scmp.ne.s32.totalorder %s79, %s82
      %p91 = scmp.eq.s32.totalorder %s27, 2
      %p92 = por %p90, %p91
      %p93 = scmp.ne.s32.totalorder %s82, %s83
      %p94 = scmp.eq.s32.totalorder %s27, 0
      %p95 = por %p93, %p94
      %p96 = scmp.ne.s32.totalorder %s82, %s83
      %p97 = scmp.eq.s32.totalorder %s28, 2
      %p98 = por %p96, %p97
      %p100 = scmp.ne.s32.totalorder %s83, %s99
      %p101 = scmp.eq.s32.totalorder %s28, 0
      %p102 = por %p100, %p101
      %s103 = ssub.s32 %s22, %s29
      %p104 = scmp.eq.s32.totalorder %s103, 0
      %s106 = sadd.s32 %s105, 1
      %s107 = scalar_select %p104, %s105, %s106
      %p110 = pneg %p104
      %p111 = scmp.eq.s32.totalorder %s22, 2
      %p112 = por %p110, %p111
      %p113 = scmp.ne.s32.totalorder %s105, %s108
      %p114 = scmp.eq.s32.totalorder %s22, 0
      %p115 = por %p113, %p114
      %p116 = scmp.ne.s32.totalorder %s105, %s108
      %p117 = scmp.eq.s32.totalorder %s27, 2
      %p118 = por %p116, %p117
      %p119 = scmp.ne.s32.totalorder %s108, %s109
      %p120 = scmp.eq.s32.totalorder %s27, 0
      %p121 = por %p119, %p120
      %p122 = scmp.ne.s32.totalorder %s108, %s109
      %p123 = scmp.eq.s32.totalorder %s28, 2
      %p124 = por %p122, %p123
      %p126 = scmp.ne.s32.totalorder %s109, %s125
      %p127 = scmp.eq.s32.totalorder %s28, 0
      %p128 = por %p126, %p127
      %s129 = ssub.s32 %s22, %s29
      %p130 = scmp.eq.s32.totalorder %s129, 0
      %s132 = sadd.s32 %s131, 1
      %s133 = scalar_select %p130, %s131, %s132
      %p136 = pneg %p130
      %p137 = scmp.eq.s32.totalorder %s22, 2
      %p138 = por %p136, %p137
      %p139 = scmp.ne.s32.totalorder %s131, %s134
      %p140 = scmp.eq.s32.totalorder %s22, 0
      %p141 = por %p139, %p140
      %p142 = scmp.ne.s32.totalorder %s131, %s134
      %p143 = scmp.eq.s32.totalorder %s27, 2
      %p144 = por %p142, %p143
      %p145 = scmp.ne.s32.totalorder %s134, %s135
      %p146 = scmp.eq.s32.totalorder %s27, 0
      %p147 = por %p145, %p146
      %p148 = scmp.ne.s32.totalorder %s134, %s135
      %p149 = scmp.eq.s32.totalorder %s28, 2
      %p150 = por %p148, %p149
      %p152 = scmp.ne.s32.totalorder %s135, %s151
      %p153 = scmp.eq.s32.totalorder %s28, 0
      %p154 = por %p152, %p153
      %s155 = ssub.s32 %s22, %s29
      %p156 = scmp.eq.s32.totalorder %s155, 0
      %s158 = sadd.s32 %s157, 1
      %s159 = scalar_select %p156, %s157, %s158
      %p162 = pneg %p156
      %p163 = scmp.eq.s32.totalorder %s22, 2
      %p164 = por %p162, %p163
      %p165 = scmp.ne.s32.totalorder %s157, %s160
      %p166 = scmp.eq.s32.totalorder %s22, 0
      %p167 = por %p165, %p166
      %p168 = scmp.ne.s32.totalorder %s157, %s160
      %p169 = scmp.eq.s32.totalorder %s27, 2
      %p170 = por %p168, %p169
      %p171 = scmp.ne.s32.totalorder %s160, %s161
      %p172 = scmp.eq.s32.totalorder %s27, 0
      %p173 = por %p171, %p172
      %p174 = scmp.ne.s32.totalorder %s160, %s161
      %p175 = scmp.eq.s32.totalorder %s28, 2
      %p176 = por %p174, %p175
      %p178 = scmp.ne.s32.totalorder %s161, %s177
      %p179 = scmp.eq.s32.totalorder %s28, 0
      %p180 = por %p178, %p179
      %s181 = ssub.s32 %s22, %s29
      %p182 = scmp.eq.s32.totalorder %s181, 0
      %s184 = sadd.s32 %s183, 1
      %s185 = scalar_select %p182, %s183, %s184
      %p188 = pneg %p182
      %p189 = scmp.eq.s32.totalorder %s22, 2
      %p190 = por %p188, %p189
      %p191 = scmp.ne.s32.totalorder %s183, %s186
      %p192 = scmp.eq.s32.totalorder %s22, 0
      %p193 = por %p191, %p192
      %p194 = scmp.ne.s32.totalorder %s183, %s186
      %p195 = scmp.eq.s32.totalorder %s27, 2
      %p196 = por %p194, %p195
      %p197 = scmp.ne.s32.totalorder %s186, %s187
      %p198 = scmp.eq.s32.totalorder %s27, 0
      %p199 = por %p197, %p198
      %p200 = scmp.ne.s32.totalorder %s186, %s187
      %p201 = scmp.eq.s32.totalorder %s28, 2
      %p202 = por %p200, %p201
      %p204 = scmp.ne.s32.totalorder %s187, %s203
      %p205 = scmp.eq.s32.totalorder %s28, 0
      %p206 = por %p204, %p205
      %p207 = scmp.le.s32.totalorder 1, %s22
      %p208 = scmp.lt.s32.totalorder %s22, 4
      %p209 = pnand %p207, %p208
      %p210 = pneg %p209
      // Predicated region
      $region9: #{_lambda_.1} parent=5 // pred_check
        _
      $region10: #{_lambda_.1} parent=5 // pred_check_branch
        %212 = sbr.rel (%p209) target = $region12
      $region11: #{_lambda_.1} parent=5 // pred_region
        %s213 = ssub.s32 %s22, 1
        // Predicated region
        $region13: #{_lambda_.1} parent=11 // pred_check
          %p214 = pneg %p43
        $region14: #{_lambda_.1} parent=11 // pred_check_branch
          %216 = sbr.rel (%p214) target = $region16
        $region15: #{_lambda_.1} parent=11 // pred_region
          %s218 = ssub.s32 128, 128
          %219 = vsyncadd [#allocation4], %s218
          %s221 = sshll.u32 [#allocation3], 4
          %s222 = int_to_ptr.vmem [resolvable:$true] %s221
          %224 = dma.hbm_to_vmem [thread:$0]  %s0, 128, %s222, [#allocation4]
        $region16: #{_lambda_.1} parent=11 // pred_fallthru
          _
      $region12: #{_lambda_.1} parent=5 // pred_fallthru
        _
      %p225 = scmp.lt.s32.totalorder %s22, 3
      // Predicated region
      $region17: #{_lambda_.1} parent=5 // pred_check
        %p226 = pneg %p225
      $region18: #{_lambda_.1} parent=5 // pred_check_branch
        %228 = sbr.rel (%p226) target = $region20
      $region19: #{_lambda_.1} parent=5 // pred_region
        // Predicated region
        $region21: #{_lambda_.1} parent=19 // pred_check
          %p229 = pneg %p63
        $region22: #{_lambda_.1} parent=19 // pred_check_branch
          %231 = sbr.rel (%p229) target = $region24
        $region23: #{_lambda_.1} parent=19 // pred_region
          %s232 = sand.u32 %s22, 1
          %s233 = scalar_lea.sflag [#allocation7], %s232
          %s234 = sand.u32 %s53, 1
          %s235 = smul.addr %s234, 8
          %s236 = scalar_lea.vmem [#allocation6], %s235
          %s238 = ssub.s32 128, 128
          %239 = vsyncadd %s233, %s238
          %s240 = smul.addr %s22, 128
          %s241 = scalar_lea.hbm %s1, %s240
          %s243 = sshll.u32 %s236, 4
          %s244 = int_to_ptr.vmem [resolvable:$true] %s243
          %246 = dma.hbm_to_vmem [thread:$0]  %s241, 128, %s244, %s233
        $region24: #{_lambda_.1} parent=19 // pred_fallthru
          _
        // Predicated region
        $region25: #{_lambda_.1} parent=19 // pred_check
          %p247 = pneg %p89
        $region26: #{_lambda_.1} parent=19 // pred_check_branch
          %249 = sbr.rel (%p247) target = $region28
        $region27: #{_lambda_.1} parent=19 // pred_region
          %s250 = sand.u32 %s22, 1
          %s251 = scalar_lea.sflag [#allocation7], %s250
          %s252 = sand.u32 %s79, 1
          %s253 = smul.addr %s252, 384
          %s254 = scalar_lea.vmem [#allocation8], %s253
          %s256 = ssub.s32 6144, 6144
          %257 = vsyncadd %s251, %s256
          %s258 = smul.addr %s22, 48
          %s259 = smul.addr %s258, 128
          %s260 = scalar_lea.hbm %s2, %s259
          %s261 = sshll.u32 %s254, 4
          %s262 = int_to_ptr.vmem [resolvable:$true] %s261
          %267 = dma.hbm_to_vmem [thread:$0]  %s260, 6144, %s262, %s251, 384, 384, 24
        $region28: #{_lambda_.1} parent=19 // pred_fallthru
          _
        // Predicated region
        $region29: #{_lambda_.1} parent=19 // pred_check
          %p268 = pneg %p115
        $region30: #{_lambda_.1} parent=19 // pred_check_branch
          %270 = sbr.rel (%p268) target = $region32
        $region31: #{_lambda_.1} parent=19 // pred_region
          %s271 = sand.u32 %s105, 1
          %s272 = scalar_lea.sflag [#allocation10], %s271
          %s273 = sand.u32 %s105, 1
          %s274 = smul.addr %s273, 384
          %s275 = scalar_lea.vmem [#allocation9], %s274
          %s277 = ssub.s32 6144, 6144
          %278 = vsyncadd %s272, %s277
          %s279 = smul.addr %s22, 48
          %s280 = smul.addr %s279, 128
          %s281 = scalar_lea.hbm %s3, %s280
          %s282 = sshll.u32 %s275, 4
          %s283 = int_to_ptr.vmem [resolvable:$true] %s282
          %288 = dma.hbm_to_vmem [thread:$0]  %s281, 6144, %s283, %s272, 384, 384, 24
        $region32: #{_lambda_.1} parent=19 // pred_fallthru
          _
        // Predicated region
        $region33: #{_lambda_.1} parent=19 // pred_check
          %p289 = pneg %p141
        $region34: #{_lambda_.1} parent=19 // pred_check_branch
          %291 = sbr.rel (%p289) target = $region36
        $region35: #{_lambda_.1} parent=19 // pred_region
          %p292 = scmp.lt.s32.totalorder %s22, 2
          %s293 = scalar_select %p292, %s22, 2
          %s294 = smul.addr %s293, 3
          %s295 = scalar_lea.vmem %s4, %s294
        $region36: #{_lambda_.1} parent=19 // pred_fallthru
          _
        // Predicated region
        $region37: #{_lambda_.1} parent=19 // pred_check
          %p296 = pneg %p167
        $region38: #{_lambda_.1} parent=19 // pred_check_branch
          %298 = sbr.rel (%p296) target = $region40
        $region39: #{_lambda_.1} parent=19 // pred_region
          %p299 = scmp.lt.s32.totalorder %s22, 2
          %s300 = scalar_select %p299, %s22, 2
          %s301 = smul.addr %s300, 3
          %s302 = scalar_lea.vmem %s5, %s301
        $region40: #{_lambda_.1} parent=19 // pred_fallthru
          _
      $region20: #{_lambda_.1} parent=5 // pred_fallthru
        _
      %p303 = scmp.le.s32.totalorder 1, %s22
      %p304 = scmp.lt.s32.totalorder %s22, 4
      %p305 = pnand %p303, %p304
      %p306 = pneg %p305
      // Predicated region
      $region41: #{_lambda_.1} parent=5 // pred_check
        _
      $region42: #{_lambda_.1} parent=5 // pred_check_branch
        %308 = sbr.rel (%p305) target = $region44
      $region43: #{_lambda_.1} parent=5 // pred_region
        %s309 = ssub.s32 %s22, 1
        // Predicated region
        $region45: #{_lambda_.1} parent=43 // pred_check
          %p310 = pneg %p43
        $region46: #{_lambda_.1} parent=43 // pred_check_branch
          %312 = sbr.rel (%p310) target = $region48
        $region47: #{_lambda_.1} parent=43 // pred_region
          %313 = dma.done [#allocation4], 128
        $region48: #{_lambda_.1} parent=43 // pred_fallthru
          _
        %s314 = sand.u32 %s27, 1
        %s315 = scalar_lea.sflag [#allocation7], %s314
        %s316 = sand.u32 %s56, 1
        %s317 = smul.addr %s316, 8
        %s318 = scalar_lea.vmem [#allocation6], %s317
        // Predicated region
        $region49: #{_lambda_.1} parent=43 // pred_check
          %p319 = pneg %p69
        $region50: #{_lambda_.1} parent=43 // pred_check_branch
          %321 = sbr.rel (%p319) target = $region52
        $region51: #{_lambda_.1} parent=43 // pred_region
          %322 = dma.done %s315, 128
        $region52: #{_lambda_.1} parent=43 // pred_fallthru
          _
        %s323 = sand.u32 %s27, 1
        %s324 = scalar_lea.sflag [#allocation7], %s323
        %s325 = sand.u32 %s82, 1
        %s326 = smul.addr %s325, 384
        %s327 = scalar_lea.vmem [#allocation8], %s326
        // Predicated region
        $region53: #{_lambda_.1} parent=43 // pred_check
          %p328 = pneg %p95
        $region54: #{_lambda_.1} parent=43 // pred_check_branch
          %330 = sbr.rel (%p328) target = $region56
        $region55: #{_lambda_.1} parent=43 // pred_region
          %331 = dma.done %s324, 6144
        $region56: #{_lambda_.1} parent=43 // pred_fallthru
          _
        %s332 = sand.u32 %s108, 1
        %s333 = scalar_lea.sflag [#allocation10], %s332
        %s334 = sand.u32 %s108, 1
        %s335 = smul.addr %s334, 384
        %s336 = scalar_lea.vmem [#allocation9], %s335
        // Predicated region
        $region57: #{_lambda_.1} parent=43 // pred_check
          %p337 = pneg %p121
        $region58: #{_lambda_.1} parent=43 // pred_check_branch
          %339 = sbr.rel (%p337) target = $region60
        $region59: #{_lambda_.1} parent=43 // pred_region
          %340 = dma.done %s333, 6144
        $region60: #{_lambda_.1} parent=43 // pred_fallthru
          _
        %p341 = pneg %p43
        %p342 = pneg %p40
        %s343 = sand.u32 %s27, 1
        %s344 = scalar_lea.sflag [#allocation7], %s343
        %s345 = sand.u32 %s56, 1
        %s346 = smul.addr %s345, 8
        %s347 = scalar_lea.vmem [#allocation6], %s346
        %p348 = pneg %p69
        %p349 = pneg %p66
        %s350 = sand.u32 %s27, 1
        %s351 = scalar_lea.sflag [#allocation7], %s350
        %s352 = sand.u32 %s82, 1
        %s353 = smul.addr %s352, 384
        %s354 = scalar_lea.vmem [#allocation8], %s353
        %p355 = pneg %p95
        %p356 = pneg %p92
        %s357 = sand.u32 %s108, 1
        %s358 = scalar_lea.sflag [#allocation10], %s357
        %s359 = sand.u32 %s108, 1
        %s360 = smul.addr %s359, 384
        %s361 = scalar_lea.vmem [#allocation9], %s360
        %p362 = pneg %p121
        %p363 = pneg %p118
        %p364 = scmp.lt.s32.totalorder %s27, 2
        %s365 = scalar_select %p364, %s27, 2
        %s366 = smul.addr %s365, 3
        %s367 = scalar_lea.vmem %s4, %s366
        %p368 = pneg %p147
        %p369 = pneg %p144
        %p370 = scmp.lt.s32.totalorder %s27, 2
        %s371 = scalar_select %p370, %s27, 2
        %s372 = smul.addr %s371, 3
        %s373 = scalar_lea.vmem %s5, %s372
        %p374 = pneg %p173
        %p375 = pneg %p170
        %p376 = pneg %p199
        %p377 = pneg %p196
        %s378 = sand.u32 %s186, 1
        %s379 = scalar_lea.sflag [#allocation5], %s378
        %s380 = sand.u32 %s186, 1
        %s381 = smul.addr %s380, 8
        %s382 = scalar_lea.vmem [#allocation11], %s381
        %p383 = scmp.lt.s32.totalorder %s27, 2
        %s384 = scalar_select %p383, %s27, 2
        %s385 = smul.addr %s384, 3
        %s386 = scalar_lea.vmem %s4, %s385
        %p387 = scmp.lt.s32.totalorder %s27, 2
        %s388 = scalar_select %p387, %s27, 2
        %s389 = smul.addr %s388, 3
        %s390 = scalar_lea.vmem %s5, %s389
        %p391 = scmp.eq.s32.totalorder %s27, 0
        // Predicated region
        $region61: #{_lambda_.1} parent=43 // pred_check
          %p392 = pneg %p391
        $region62: #{_lambda_.1} parent=43 // pred_check_branch
          %394 = sbr.rel (%p392) target = $region64
        $region63: #{_lambda_.1} parent=43 // pred_region
          %v395 = vld [vmem:[#allocation3] sm:$0xff]
          %396 = vst [vmem:[#allocation2] sm:$0xff] %v395
        $region64: #{_lambda_.1} parent=43 // pred_fallthru
          _
        %v397 = vld [vmem:[#allocation2] sm:$0xff]
        %v398 = vld [vmem:[%s318] sm:$0xff]
        %v399 = vld [vmem:[%s327] sm:$0xff]
        %v400 = vld [vmem:[%s327 + $0x8] sm:$0xff]
        %v401 = vld [vmem:[%s327 + $0x10] sm:$0xff]
        %v402 = vld [vmem:[%s327 + $0x18] sm:$0xff]
        %v403 = vld [vmem:[%s327 + $0x20] sm:$0xff]
        %v404 = vld [vmem:[%s327 + $0x28] sm:$0xff]
        %v405 = vld [vmem:[%s327 + $0x30] sm:$0xff]
        %v406 = vld [vmem:[%s327 + $0x38] sm:$0xff]
        %v407 = vld [vmem:[%s327 + $0x40] sm:$0xff]
        %v408 = vld [vmem:[%s327 + $0x48] sm:$0xff]
        %v409 = vld [vmem:[%s327 + $0x50] sm:$0xff]
        %v410 = vld [vmem:[%s327 + $0x58] sm:$0xff]
        %v411 = vld [vmem:[%s327 + $0x60] sm:$0xff]
        %v412 = vld [vmem:[%s327 + $0x68] sm:$0xff]
        %v413 = vld [vmem:[%s327 + $0x70] sm:$0xff]
        %v414 = vld [vmem:[%s327 + $0x78] sm:$0xff]
        %v415 = vld [vmem:[%s327 + $0x80] sm:$0xff]
        %v416 = vld [vmem:[%s327 + $0x88] sm:$0xff]
        %v417 = vld [vmem:[%s327 + $0x90] sm:$0xff]
        %v418 = vld [vmem:[%s327 + $0x98] sm:$0xff]
        %v419 = vld [vmem:[%s327 + $0xa0] sm:$0xff]
        %v420 = vld [vmem:[%s327 + $0xa8] sm:$0xff]
        %v421 = vld [vmem:[%s327 + $0xb0] sm:$0xff]
        %v422 = vld [vmem:[%s327 + $0xb8] sm:$0xff]
        %v423 = vld [vmem:[%s327 + $0xc0] sm:$0xff]
        %v424 = vld [vmem:[%s327 + $0xc8] sm:$0xff]
        %v425 = vld [vmem:[%s327 + $0xd0] sm:$0xff]
        %v426 = vld [vmem:[%s327 + $0xd8] sm:$0xff]
        %v427 = vld [vmem:[%s327 + $0xe0] sm:$0xff]
        %v428 = vld [vmem:[%s327 + $0xe8] sm:$0xff]
        %v429 = vld [vmem:[%s327 + $0xf0] sm:$0xff]
        %v430 = vld [vmem:[%s327 + $0xf8] sm:$0xff]
        %v431 = vld [vmem:[%s327 + $0x100] sm:$0xff]
        %v432 = vld [vmem:[%s327 + $0x108] sm:$0xff]
        %v433 = vld [vmem:[%s327 + $0x110] sm:$0xff]
        %v434 = vld [vmem:[%s327 + $0x118] sm:$0xff]
        %v435 = vld [vmem:[%s327 + $0x120] sm:$0xff]
        %v436 = vld [vmem:[%s327 + $0x128] sm:$0xff]
        %v437 = vld [vmem:[%s327 + $0x130] sm:$0xff]
        %v438 = vld [vmem:[%s327 + $0x138] sm:$0xff]
        %v439 = vld [vmem:[%s327 + $0x140] sm:$0xff]
        %v440 = vld [vmem:[%s327 + $0x148] sm:$0xff]
        %v441 = vld [vmem:[%s327 + $0x150] sm:$0xff]
        %v442 = vld [vmem:[%s327 + $0x158] sm:$0xff]
        %v443 = vld [vmem:[%s327 + $0x160] sm:$0xff]
        %v444 = vld [vmem:[%s327 + $0x168] sm:$0xff]
        %v445 = vld [vmem:[%s327 + $0x170] sm:$0xff]
        %v446 = vld [vmem:[%s327 + $0x178] sm:$0xff]
        %v447 = vld [vmem:[%s386] sm:$0x7]
        %v449 = vlaneseq
        %v450 = vshrl.u32 %v449, 7
        %v451 = vsub.s32 0, %v450
        %v452 = vrot.slane %v447, %v451
        %v453 = vlaneseq
        %v454 = vshrl.u32 %v453, 7
        %v455 = vsub.s32 1, %v454
        %v456 = vrot.slane %v447, %v455
        %v457 = vlaneseq
        %v458 = vshrl.u32 %v457, 7
        %v459 = vsub.s32 2, %v458
        %v460 = vrot.slane %v447, %v459
        %464 = vmatprep.subr.mxu0 %v400
        %465 = vmatpush1.msra.mxu0 %v399
        %466 = vmatprep.subr.mxu0 %v403
        %467 = vmatpush1.msra.mxu0 %v402
        %468 = vmatprep.subr.mxu0 %v406
        %469 = vmatpush1.msra.mxu0 %v405
        %470 = vmatprep.subr.mxu0 %v409
        %471 = vmatpush1.msra.mxu0 %v408
        %472 = vmatprep.subr.mxu0 %v412
        %473 = vmatpush1.msra.mxu0 %v411
        %474 = vmatprep.subr.mxu0 %v415
        %475 = vmatpush1.msra.mxu0 %v414
        %476 = vmatprep.subr.mxu0 %v418
        %477 = vmatpush1.msra.mxu0 %v417
        %478 = vmatprep.subr.mxu0 %v421
        %479 = vmatpush1.msra.mxu0 %v420
        %480 = vmatprep.subr.mxu0 %v424
        %481 = vmatpush1.msra.mxu0 %v423
        %482 = vmatprep.subr.mxu0 %v427
        %483 = vmatpush1.msra.mxu0 %v426
        %484 = vmatprep.subr.mxu0 %v430
        %485 = vmatpush1.msra.mxu0 %v429
        %486 = vmatprep.subr.mxu0 %v433
        %487 = vmatpush1.msra.mxu0 %v432
        %488 = vmatprep.subr.mxu0 %v436
        %489 = vmatpush1.msra.mxu0 %v435
        %490 = vmatprep.subr.mxu0 %v439
        %491 = vmatpush1.msra.mxu0 %v438
        %492 = vmatprep.subr.mxu0 %v442
        %493 = vmatpush1.msra.mxu0 %v441
        %494 = vmatprep.subr.mxu0 %v445
        %495 = vmatpush1.msra.mxu0 %v444
        %496 = vmatprep.subr.mxu0 0.0
        %497 = vmatpush1.msra.mxu0 0.0
        %498 = vmatprep.subr.mxu0 0.0
        %499 = vmatpush1.msra.mxu0 0.0
        %500 = vmatprep.subr.mxu0 0.0
        %501 = vmatpush1.msra.mxu0 0.0
        %502 = vmatprep.subr.mxu0 0.0
        %503 = vmatpush1.msra.mxu0 0.0
        %504 = vmatprep.subr.mxu0 0.0
        %505 = vmatpush1.msra.mxu0 0.0
        %506 = vmatprep.subr.mxu0 0.0
        %507 = vmatpush1.msra.mxu0 0.0
        %508 = vmatprep.subr.mxu0 0.0
        %509 = vmatpush1.msra.mxu0 0.0
        %510 = vmatprep.subr.mxu0 0.0
        %511 = vmatpush1.msra.mxu0 0.0
        %512 = vmatprep.subr.mxu0 0.0
        %513 = vmatpush1.msra.mxu0 0.0
        %514 = vmatprep.subr.mxu0 0.0
        %515 = vmatpush1.msra.mxu0 0.0
        %516 = vmatprep.subr.mxu0 0.0
        %517 = vmatpush1.msra.mxu0 0.0
        %518 = vmatprep.subr.mxu0 0.0
        %519 = vmatpush1.msra.mxu0 0.0
        %520 = vmatprep.subr.mxu0 0.0
        %521 = vmatpush1.msra.mxu0 0.0
        %522 = vmatprep.subr.mxu0 0.0
        %523 = vmatpush1.msra.mxu0 0.0
        %524 = vmatprep.subr.mxu0 0.0
        %525 = vmatpush1.msra.mxu0 0.0
        %526 = vmatprep.subr.mxu0 0.0
        %527 = vmatpush1.msra.mxu0 0.0
        %528 = vmatprep.mubr.f32.mxu0 0.0
        %529 = vmatmul.mubr.f32.gmra.mrb[0].mxu0 %v397
        %v530 = vpop.f32.mrb[0].mxu0
        %v531 = vadd.f32 %v452, %v530
        %v532 = vpop.f32.mrb[0].mxu0
        %v533 = vadd.f32 %v456, %v532
        %534 = vdwg.mxu0
        %535 = vmatprep.subr.mxu0 0.0
        %536 = vmatpush1.msra.mxu0 %v401
        %537 = vmatprep.subr.mxu0 0.0
        %538 = vmatpush1.msra.mxu0 %v404
        %539 = vmatprep.subr.mxu0 0.0
        %540 = vmatpush1.msra.mxu0 %v407
        %541 = vmatprep.subr.mxu0 0.0
        %542 = vmatpush1.msra.mxu0 %v410
        %543 = vmatprep.subr.mxu0 0.0
        %544 = vmatpush1.msra.mxu0 %v413
        %545 = vmatprep.subr.mxu0 0.0
        %546 = vmatpush1.msra.mxu0 %v416
        %547 = vmatprep.subr.mxu0 0.0
        %548 = vmatpush1.msra.mxu0 %v419
        %549 = vmatprep.subr.mxu0 0.0
        %550 = vmatpush1.msra.mxu0 %v422
        %551 = vmatprep.subr.mxu0 0.0
        %552 = vmatpush1.msra.mxu0 %v425
        %553 = vmatprep.subr.mxu0 0.0
        %554 = vmatpush1.msra.mxu0 %v428
        %555 = vmatprep.subr.mxu0 0.0
        %556 = vmatpush1.msra.mxu0 %v431
        %557 = vmatprep.subr.mxu0 0.0
        %558 = vmatpush1.msra.mxu0 %v434
        %559 = vmatprep.subr.mxu0 0.0
        %560 = vmatpush1.msra.mxu0 %v437
        %561 = vmatprep.subr.mxu0 0.0
        %562 = vmatpush1.msra.mxu0 %v440
        %563 = vmatprep.subr.mxu0 0.0
        %564 = vmatpush1.msra.mxu0 %v443
        %565 = vmatprep.subr.mxu0 0.0
        %566 = vmatpush1.msra.mxu0 %v446
        %567 = vmatprep.subr.mxu0 0.0
        %568 = vmatpush1.msra.mxu0 0.0
        %569 = vmatprep.subr.mxu0 0.0
        %570 = vmatpush1.msra.mxu0 0.0
        %571 = vmatprep.subr.mxu0 0.0
        %572 = vmatpush1.msra.mxu0 0.0
        %573 = vmatprep.subr.mxu0 0.0
        %574 = vmatpush1.msra.mxu0 0.0
        %575 = vmatprep.subr.mxu0 0.0
        %576 = vmatpush1.msra.mxu0 0.0
        %577 = vmatprep.subr.mxu0 0.0
        %578 = vmatpush1.msra.mxu0 0.0
        %579 = vmatprep.subr.mxu0 0.0
        %580 = vmatpush1.msra.mxu0 0.0
        %581 = vmatprep.subr.mxu0 0.0
        %582 = vmatpush1.msra.mxu0 0.0
        %583 = vmatprep.subr.mxu0 0.0
        %584 = vmatpush1.msra.mxu0 0.0
        %585 = vmatprep.subr.mxu0 0.0
        %586 = vmatpush1.msra.mxu0 0.0
        %587 = vmatprep.subr.mxu0 0.0
        %588 = vmatpush1.msra.mxu0 0.0
        %589 = vmatprep.subr.mxu0 0.0
        %590 = vmatpush1.msra.mxu0 0.0
        %591 = vmatprep.subr.mxu0 0.0
        %592 = vmatpush1.msra.mxu0 0.0
        %593 = vmatprep.subr.mxu0 0.0
        %594 = vmatpush1.msra.mxu0 0.0
        %595 = vmatprep.subr.mxu0 0.0
        %596 = vmatpush1.msra.mxu0 0.0
        %597 = vmatprep.subr.mxu0 0.0
        %598 = vmatpush1.msra.mxu0 0.0
        %599 = vmatprep.mubr.f32.mxu0 0.0
        %600 = vmatmul.mubr.f32.gmra.mrb[0].mxu0 %v397
        %v601 = vpop.f32.mrb[0].mxu0
        %v602 = vadd.f32 %v460, %v601
        %v603 = vpop.f32.mrb[0].mxu0
        %604 = vdwg.mxu0
        %v605 = vld [vmem:[%s336] sm:$0xff]
        %v606 = vld [vmem:[%s336 + $0x8] sm:$0xff]
        %v607 = vld [vmem:[%s336 + $0x10] sm:$0xff]
        %v608 = vld [vmem:[%s336 + $0x18] sm:$0xff]
        %v609 = vld [vmem:[%s336 + $0x20] sm:$0xff]
        %v610 = vld [vmem:[%s336 + $0x28] sm:$0xff]
        %v611 = vld [vmem:[%s336 + $0x30] sm:$0xff]
        %v612 = vld [vmem:[%s336 + $0x38] sm:$0xff]
        %v613 = vld [vmem:[%s336 + $0x40] sm:$0xff]
        %v614 = vld [vmem:[%s336 + $0x48] sm:$0xff]
        %v615 = vld [vmem:[%s336 + $0x50] sm:$0xff]
        %v616 = vld [vmem:[%s336 + $0x58] sm:$0xff]
        %v617 = vld [vmem:[%s336 + $0x60] sm:$0xff]
        %v618 = vld [vmem:[%s336 + $0x68] sm:$0xff]
        %v619 = vld [vmem:[%s336 + $0x70] sm:$0xff]
        %v620 = vld [vmem:[%s336 + $0x78] sm:$0xff]
        %v621 = vld [vmem:[%s336 + $0x80] sm:$0xff]
        %v622 = vld [vmem:[%s336 + $0x88] sm:$0xff]
        %v623 = vld [vmem:[%s336 + $0x90] sm:$0xff]
        %v624 = vld [vmem:[%s336 + $0x98] sm:$0xff]
        %v625 = vld [vmem:[%s336 + $0xa0] sm:$0xff]
        %v626 = vld [vmem:[%s336 + $0xa8] sm:$0xff]
        %v627 = vld [vmem:[%s336 + $0xb0] sm:$0xff]
        %v628 = vld [vmem:[%s336 + $0xb8] sm:$0xff]
        %v629 = vld [vmem:[%s336 + $0xc0] sm:$0xff]
        %v630 = vld [vmem:[%s336 + $0xc8] sm:$0xff]
        %v631 = vld [vmem:[%s336 + $0xd0] sm:$0xff]
        %v632 = vld [vmem:[%s336 + $0xd8] sm:$0xff]
        %v633 = vld [vmem:[%s336 + $0xe0] sm:$0xff]
        %v634 = vld [vmem:[%s336 + $0xe8] sm:$0xff]
        %v635 = vld [vmem:[%s336 + $0xf0] sm:$0xff]
        %v636 = vld [vmem:[%s336 + $0xf8] sm:$0xff]
        %v637 = vld [vmem:[%s336 + $0x100] sm:$0xff]
        %v638 = vld [vmem:[%s336 + $0x108] sm:$0xff]
        %v639 = vld [vmem:[%s336 + $0x110] sm:$0xff]
        %v640 = vld [vmem:[%s336 + $0x118] sm:$0xff]
        %v641 = vld [vmem:[%s336 + $0x120] sm:$0xff]
        %v642 = vld [vmem:[%s336 + $0x128] sm:$0xff]
        %v643 = vld [vmem:[%s336 + $0x130] sm:$0xff]
        %v644 = vld [vmem:[%s336 + $0x138] sm:$0xff]
        %v645 = vld [vmem:[%s336 + $0x140] sm:$0xff]
        %v646 = vld [vmem:[%s336 + $0x148] sm:$0xff]
        %v647 = vld [vmem:[%s336 + $0x150] sm:$0xff]
        %v648 = vld [vmem:[%s336 + $0x158] sm:$0xff]
        %v649 = vld [vmem:[%s336 + $0x160] sm:$0xff]
        %v650 = vld [vmem:[%s336 + $0x168] sm:$0xff]
        %v651 = vld [vmem:[%s336 + $0x170] sm:$0xff]
        %v652 = vld [vmem:[%s336 + $0x178] sm:$0xff]
        %v653 = vld [vmem:[%s390] sm:$0x7]
        %v655 = vlaneseq
        %v656 = vshrl.u32 %v655, 7
        %v657 = vsub.s32 0, %v656
        %v658 = vrot.slane %v653, %v657
        %v659 = vlaneseq
        %v660 = vshrl.u32 %v659, 7
        %v661 = vsub.s32 1, %v660
        %v662 = vrot.slane %v653, %v661
        %v663 = vlaneseq
        %v664 = vshrl.u32 %v663, 7
        %v665 = vsub.s32 2, %v664
        %v666 = vrot.slane %v653, %v665
        %670 = vmatprep.subr.mxu0 %v606
        %671 = vmatpush1.msra.mxu0 %v605
        %672 = vmatprep.subr.mxu0 %v609
        %673 = vmatpush1.msra.mxu0 %v608
        %674 = vmatprep.subr.mxu0 %v612
        %675 = vmatpush1.msra.mxu0 %v611
        %676 = vmatprep.subr.mxu0 %v615
        %677 = vmatpush1.msra.mxu0 %v614
        %678 = vmatprep.subr.mxu0 %v618
        %679 = vmatpush1.msra.mxu0 %v617
        %680 = vmatprep.subr.mxu0 %v621
        %681 = vmatpush1.msra.mxu0 %v620
        %682 = vmatprep.subr.mxu0 %v624
        %683 = vmatpush1.msra.mxu0 %v623
        %684 = vmatprep.subr.mxu0 %v627
        %685 = vmatpush1.msra.mxu0 %v626
        %686 = vmatprep.subr.mxu0 %v630
        %687 = vmatpush1.msra.mxu0 %v629
        %688 = vmatprep.subr.mxu0 %v633
        %689 = vmatpush1.msra.mxu0 %v632
        %690 = vmatprep.subr.mxu0 %v636
        %691 = vmatpush1.msra.mxu0 %v635
        %692 = vmatprep.subr.mxu0 %v639
        %693 = vmatpush1.msra.mxu0 %v638
        %694 = vmatprep.subr.mxu0 %v642
        %695 = vmatpush1.msra.mxu0 %v641
        %696 = vmatprep.subr.mxu0 %v645
        %697 = vmatpush1.msra.mxu0 %v644
        %698 = vmatprep.subr.mxu0 %v648
        %699 = vmatpush1.msra.mxu0 %v647
        %700 = vmatprep.subr.mxu0 %v651
        %701 = vmatpush1.msra.mxu0 %v650
        %702 = vmatprep.subr.mxu0 0.0
        %703 = vmatpush1.msra.mxu0 0.0
        %704 = vmatprep.subr.mxu0 0.0
        %705 = vmatpush1.msra.mxu0 0.0
        %706 = vmatprep.subr.mxu0 0.0
        %707 = vmatpush1.msra.mxu0 0.0
        %708 = vmatprep.subr.mxu0 0.0
        %709 = vmatpush1.msra.mxu0 0.0
        %710 = vmatprep.subr.mxu0 0.0
        %711 = vmatpush1.msra.mxu0 0.0
        %712 = vmatprep.subr.mxu0 0.0
        %713 = vmatpush1.msra.mxu0 0.0
        %714 = vmatprep.subr.mxu0 0.0
        %715 = vmatpush1.msra.mxu0 0.0
        %716 = vmatprep.subr.mxu0 0.0
        %717 = vmatpush1.msra.mxu0 0.0
        %718 = vmatprep.subr.mxu0 0.0
        %719 = vmatpush1.msra.mxu0 0.0
        %720 = vmatprep.subr.mxu0 0.0
        %721 = vmatpush1.msra.mxu0 0.0
        %722 = vmatprep.subr.mxu0 0.0
        %723 = vmatpush1.msra.mxu0 0.0
        %724 = vmatprep.subr.mxu0 0.0
        %725 = vmatpush1.msra.mxu0 0.0
        %726 = vmatprep.subr.mxu0 0.0
        %727 = vmatpush1.msra.mxu0 0.0
        %728 = vmatprep.subr.mxu0 0.0
        %729 = vmatpush1.msra.mxu0 0.0
        %730 = vmatprep.subr.mxu0 0.0
        %731 = vmatpush1.msra.mxu0 0.0
        %732 = vmatprep.subr.mxu0 0.0
        %733 = vmatpush1.msra.mxu0 0.0
        %734 = vmatprep.mubr.f32.mxu0 0.0
        %735 = vmatmul.mubr.f32.gmra.mrb[0].mxu0 %v398
        %v736 = vpop.f32.mrb[0].mxu0
        %v737 = vadd.f32 %v658, %v736
        %v738 = vpop.f32.mrb[0].mxu0
        %v739 = vadd.f32 %v662, %v738
        %740 = vdwg.mxu0
        %741 = vmatprep.subr.mxu0 0.0
        %742 = vmatpush1.msra.mxu0 %v607
        %743 = vmatprep.subr.mxu0 0.0
        %744 = vmatpush1.msra.mxu0 %v610
        %745 = vmatprep.subr.mxu0 0.0
        %746 = vmatpush1.msra.mxu0 %v613
        %747 = vmatprep.subr.mxu0 0.0
        %748 = vmatpush1.msra.mxu0 %v616
        %749 = vmatprep.subr.mxu0 0.0
        %750 = vmatpush1.msra.mxu0 %v619
        %751 = vmatprep.subr.mxu0 0.0
        %752 = vmatpush1.msra.mxu0 %v622
        %753 = vmatprep.subr.mxu0 0.0
        %754 = vmatpush1.msra.mxu0 %v625
        %755 = vmatprep.subr.mxu0 0.0
        %756 = vmatpush1.msra.mxu0 %v628
        %757 = vmatprep.subr.mxu0 0.0
        %758 = vmatpush1.msra.mxu0 %v631
        %759 = vmatprep.subr.mxu0 0.0
        %760 = vmatpush1.msra.mxu0 %v634
        %761 = vmatprep.subr.mxu0 0.0
        %762 = vmatpush1.msra.mxu0 %v637
        %763 = vmatprep.subr.mxu0 0.0
        %764 = vmatpush1.msra.mxu0 %v640
        %765 = vmatprep.subr.mxu0 0.0
        %766 = vmatpush1.msra.mxu0 %v643
        %767 = vmatprep.subr.mxu0 0.0
        %768 = vmatpush1.msra.mxu0 %v646
        %769 = vmatprep.subr.mxu0 0.0
        %770 = vmatpush1.msra.mxu0 %v649
        %771 = vmatprep.subr.mxu0 0.0
        %772 = vmatpush1.msra.mxu0 %v652
        %773 = vmatprep.subr.mxu0 0.0
        %774 = vmatpush1.msra.mxu0 0.0
        %775 = vmatprep.subr.mxu0 0.0
        %776 = vmatpush1.msra.mxu0 0.0
        %777 = vmatprep.subr.mxu0 0.0
        %778 = vmatpush1.msra.mxu0 0.0
        %779 = vmatprep.subr.mxu0 0.0
        %780 = vmatpush1.msra.mxu0 0.0
        %781 = vmatprep.subr.mxu0 0.0
        %782 = vmatpush1.msra.mxu0 0.0
        %783 = vmatprep.subr.mxu0 0.0
        %784 = vmatpush1.msra.mxu0 0.0
        %785 = vmatprep.subr.mxu0 0.0
        %786 = vmatpush1.msra.mxu0 0.0
        %787 = vmatprep.subr.mxu0 0.0
        %788 = vmatpush1.msra.mxu0 0.0
        %789 = vmatprep.subr.mxu0 0.0
        %790 = vmatpush1.msra.mxu0 0.0
        %791 = vmatprep.subr.mxu0 0.0
        %792 = vmatpush1.msra.mxu0 0.0
        %793 = vmatprep.subr.mxu0 0.0
        %794 = vmatpush1.msra.mxu0 0.0
        %795 = vmatprep.subr.mxu0 0.0
        %796 = vmatpush1.msra.mxu0 0.0
        %797 = vmatprep.subr.mxu0 0.0
        %798 = vmatpush1.msra.mxu0 0.0
        %799 = vmatprep.subr.mxu0 0.0
        %800 = vmatpush1.msra.mxu0 0.0
        %801 = vmatprep.subr.mxu0 0.0
        %802 = vmatpush1.msra.mxu0 0.0
        %803 = vmatprep.subr.mxu0 0.0
        %804 = vmatpush1.msra.mxu0 0.0
        %805 = vmatprep.mubr.f32.mxu0 0.0
        %806 = vmatmul.mubr.f32.gmra.mrb[0].mxu0 %v398
        %v807 = vpop.f32.mrb[0].mxu0
        %v808 = vadd.f32 %v666, %v807
        %v809 = vpop.f32.mrb[0].mxu0
        %810 = vdwg.mxu0
        %v811 = vadd.f32 %v531, %v737
        %v812 = vxor.u32 %v811, 2147483648
        %v813 = vmul.f32 %v812, 1.442695
        %v814 = vpow.pop %v813
        %v815 = vadd.f32 %v814, 1.0
        %v816 = vrcp.pop %v815
        %v817 = vmul.f32 1.0, %v816
        %v818 = vadd.f32 %v533, %v739
        %v819 = vxor.u32 %v818, 2147483648
        %v820 = vmul.f32 %v819, 1.442695
        %v821 = vpow.pop %v820
        %v822 = vadd.f32 %v821, 1.0
        %v823 = vrcp.pop %v822
        %v824 = vmul.f32 1.0, %v823
        %v825 = vmul.f32 %v817, %v808
        %v826 = vadd.f32 %v602, %v825
        %v827 = vtanh.pop %v826
        %v828 = vsub.f32 1.0, %v824
        %v829 = vmul.f32 %v828, %v827
        %v830 = vmul.f32 %v824, %v398
        %v831 = vadd.f32 %v829, %v830
        %832 = vst [vmem:[%s382] sm:$0xff] %v831
        %833 = vst [vmem:[#allocation2] sm:$0xff] %v831
        %s834 = sand.u32 %s186, 1
        %s835 = scalar_lea.sflag [#allocation5], %s834
        %s836 = sand.u32 %s186, 1
        %s837 = smul.addr %s836, 8
        %s838 = scalar_lea.vmem [#allocation11], %s837
        // Predicated region
        $region65: #{_lambda_.1} parent=43 // pred_check
          %p839 = pneg %p196
        $region66: #{_lambda_.1} parent=43 // pred_check_branch
          %841 = sbr.rel (%p839) target = $region68
        $region67: #{_lambda_.1} parent=43 // pred_region
          %s843 = ssub.s32 128, 128
          %844 = vsyncadd %s835, %s843
          %s845 = smul.addr %s27, 128
          %s846 = scalar_lea.hbm %s6, %s845
          %s848 = sshll.u32 %s838, 4
          %s849 = int_to_ptr.vmem [resolvable:$true] %s848
          %851 = dma.vmem_to_hbm [thread:$0]  %s849, 128, %s846, %s835
        $region68: #{_lambda_.1} parent=43 // pred_fallthru
          _
      $region44: #{_lambda_.1} parent=5 // pred_fallthru
        _
      %p852 = scmp.le.s32.totalorder 2, %s22
      // Predicated region
      $region69: #{_lambda_.1} parent=5 // pred_check
        %p853 = pneg %p852
      $region70: #{_lambda_.1} parent=5 // pred_check_branch
        %855 = sbr.rel (%p853) target = $region72
      $region71: #{_lambda_.1} parent=5 // pred_region
        %s856 = ssub.s32 %s22, 2
        // Predicated region
        $region73: #{_lambda_.1} parent=71 // pred_check
          %p857 = pneg %p202
        $region74: #{_lambda_.1} parent=71 // pred_check_branch
          %859 = sbr.rel (%p857) target = $region76
        $region75: #{_lambda_.1} parent=71 // pred_region
          %s860 = sand.u32 %s187, 1
          %s861 = scalar_lea.sflag [#allocation5], %s860
          %s862 = sand.u32 %s187, 1
          %s863 = smul.addr %s862, 8
          %s864 = scalar_lea.vmem [#allocation11], %s863
          %865 = dma.done %s861, 128
        $region76: #{_lambda_.1} parent=71 // pred_fallthru
          _
      $region72: #{_lambda_.1} parent=5 // pred_fallthru
        _
    $region6: #{_lambda_.1} parent=1 // loop_footer
      %s26 = sadd.s32 1, %s22
    $region7: #{_lambda_.1} parent=1 // loop_footer_branch
      %21 = sbr.rel target = $region3
    $region8: #{_lambda_.1} parent=1 // loop_exit
      _
    %866 = vsyncpa [#allocation4], 1
    %s867 = scalar_lea.sflag [#allocation4], 1
    %868 = vsyncpa %s867, 1
    %869 = vsyncpa [#allocation7], 1
    %s870 = scalar_lea.sflag [#allocation7], 1
    %871 = vsyncpa %s870, 1
    %872 = vsyncpa [#allocation10], 1
    %s873 = scalar_lea.sflag [#allocation10], 1
    %874 = vsyncpa %s873, 1
    %875 = vsyncpa [#allocation5], 1
    %s876 = scalar_lea.sflag [#allocation5], 1
    %877 = vsyncpa %s876, 1

</llo_original>
